<compile_context>
chip_gen: v7x
topology: tpu7x:2x2x1
jax: 0.10.0
libtpu: 0.0.40
codegen_flags: <defaults>
</compile_context>

<pallas_src>
import functools

import jax
import jax.numpy as jnp
from jax.experimental import pallas as pl
from jax.experimental.pallas import tpu as pltpu


def _round_up(x, m):
    return (x + m - 1) // m * m


def gcn_kernel(adj_ref, x_ref, w_ref, b_ref, out_ref, *, indeg_col):
    # Per-graph blocks: adj (1,N,N) bf16, x (1,N,Fin_p) f32, w (Fout_p,Fin_p), b (1,Fout_p)
    adj = adj_ref[0].astype(jnp.float32)        # exact: adjacency entries are {0,1}
    x = x_ref[0]                                # [N, Fin_p]
    w = w_ref[...]                              # [Fout_p, Fin_p]
    b = b_ref[...]                              # [1, Fout_p]

    # Linear first (commutes with the per-node sum aggregation).
    # Contract on w's LAST dim -> no in-kernel transpose of w.
    y = jax.lax.dot_general(
        x, w,
        dimension_numbers=(((1,), (1,)), ((), ())),
        preferred_element_type=jnp.float32,
    )                                           # [N, Fout_p]; padding cols are exactly 0

    if indeg_col is not None:
        # Fold the in-degree into the aggregation matmul: write a ones column into one
        # of the (zero) padding lanes so agg[:, indeg_col] = row-sum of adj.
        col = jax.lax.broadcasted_iota(jnp.int32, y.shape, 1)
        y_aug = jnp.where(col == indeg_col, 1.0, y)
        agg = jnp.dot(adj, y_aug, preferred_element_type=jnp.float32)   # [N, Fout_p]
        indeg = agg[:, indeg_col:indeg_col + 1]                         # [N, 1]
    else:
        # No spare padding lane (Fout already a multiple of 128): fall back to XLU sum.
        agg = jnp.dot(adj, y, preferred_element_type=jnp.float32)
        indeg = jnp.sum(adj, axis=1, keepdims=True)

    # DGL recv: nodes with no incoming messages keep their existing 'h' (= inputs),
    # which after the reorder is simply y for that row.
    out = jnp.where(indeg > 0, agg, y) + b
    out_ref[0] = out.astype(out_ref.dtype)


def gcn_layer(adj, x, w, b):
    """adj: [G, N, N] (adj[g, v, u] = 1 iff edge u->v), x: [G, N, Fin],
    w: [Fout, Fin] (PyTorch Linear layout), b: [Fout].  Returns [G, N, Fout] f32."""
    G, N, _ = adj.shape
    f_in = x.shape[-1]
    f_out = w.shape[0]

    f_in_pad = _round_up(max(f_in, 1), 128)
    f_out_pad = _round_up(max(f_out, 1), 128)
    indeg_col = f_out if f_out < f_out_pad else None  # spare lane for the in-degree probe

    # Lane-dense padding (wrapper-side layout plumbing, sliced off at the end).
    x_p = jnp.pad(x.astype(jnp.float32), ((0, 0), (0, 0), (0, f_in_pad - f_in)))
    w_p = jnp.pad(w.astype(jnp.float32), ((0, f_out_pad - f_out), (0, f_in_pad - f_in)))
    b_p = jnp.pad(b.astype(jnp.float32).reshape(1, f_out), ((0, 0), (0, f_out_pad - f_out)))
    adj_bf16 = adj.astype(jnp.bfloat16)          # {0,1} -> lossless, half the HBM traffic

    flops = G * (2 * N * f_in_pad * f_out_pad + 2 * N * N * f_out_pad)
    bytes_accessed = (
        adj_bf16.size * 2 + x_p.size * 4 + w_p.size * 4 + b_p.size * 4
        + G * N * f_out_pad * 4
    )

    out_p = pl.pallas_call(
        functools.partial(gcn_kernel, indeg_col=indeg_col),
        out_shape=jax.ShapeDtypeStruct((G, N, f_out_pad), jnp.float32),
        grid=(G,),
        in_specs=[
            pl.BlockSpec((1, N, N), lambda g: (g, 0, 0)),
            pl.BlockSpec((1, N, f_in_pad), lambda g: (g, 0, 0)),
            pl.BlockSpec((f_out_pad, f_in_pad), lambda g: (0, 0)),
            pl.BlockSpec((1, f_out_pad), lambda g: (0, 0)),
        ],
        out_specs=pl.BlockSpec((1, N, f_out_pad), lambda g: (g, 0, 0)),
        compiler_params=pltpu.CompilerParams(
            dimension_semantics=("parallel",),
            vmem_limit_bytes=32 * 1024 * 1024,
        ),
        cost_estimate=pl.CostEstimate(
            flops=flops, transcendentals=0, bytes_accessed=bytes_accessed
        ),
    )(adj_bf16, x_p, w_p, b_p)

    return out_p[:, :, :f_out]


if __name__ == "__main__":
    key = jax.random.PRNGKey(0)
    k_adj, k_x, k_w, k_b = jax.random.split(key, 4)

    G = 8            # number of graphs batched into one pallas_call
    N = 16           # nodes per graph
    in_feats = 32
    out_feats = 32

    # Deterministic synthetic graphs: dense adjacency, adj[g, v, u] = 1 iff edge u -> v
    adj = (jax.random.uniform(k_adj, (G, N, N)) < 0.25).astype(jnp.float32)
    adj = adj * (1.0 - jnp.eye(N, dtype=jnp.float32))   # no self-loops

    x = jax.random.normal(k_x, (G, N, in_feats), dtype=jnp.float32)

    # nn.Linear(in_feats, out_feats): weight [out_feats, in_feats], bias [out_feats]
    bound = 1.0 / (in_feats ** 0.5)
    w = jax.random.uniform(k_w, (out_feats, in_feats), minval=-bound, maxval=bound,
                           dtype=jnp.float32)
    b = jax.random.uniform(k_b, (out_feats,), minval=-bound, maxval=bound,
                           dtype=jnp.float32)

    out = gcn_layer(adj, x, w, b)
    jax.block_until_ready(out)

    # Reference in plain JAX (original op order: aggregate then Linear)
    agg_ref = jnp.einsum('gvu,guf->gvf', adj, x)
    indeg = adj.sum(axis=2, keepdims=True)
    h_ref = jnp.where(indeg > 0, agg_ref, x)
    ref = jnp.einsum('gvf,of->gvo', h_ref, w) + b
    assert out.shape == (G, N, out_feats)
    assert jnp.allclose(out, ref, atol=1e-4, rtol=1e-4)

    print("KERNEL_OK")
</pallas_src>

<mosaic_0001>
module attributes {stable_mosaic.version = 11 : i64} {
  func.func @gcn_kernel(%arg0: i32, %arg1: memref<1x16x16xbf16, #tpu.memory_space<vmem>>, %arg2: memref<1x16x128xf32, #tpu.memory_space<vmem>>, %arg3: memref<128x128xf32, #tpu.memory_space<vmem>>, %arg4: memref<1x128xf32, #tpu.memory_space<vmem>>, %arg5: memref<1x16x128xf32, #tpu.memory_space<vmem>>) attributes {dimension_semantics = [#tpu.dimension_semantics<parallel>], iteration_bounds = array<i64: 8>, scalar_prefetch = 0 : i64, scratch_operands = 0 : i64, tpu.core_type = #tpu.core_type<tc>, window_params = [{transform_indices = @transform_0, window_bounds = array<i64: 1, 16, 16>}, {transform_indices = @transform_1, window_bounds = array<i64: 1, 16, 128>}, {pipeline_mode = #tpu.pipeline_mode<synchronous>, transform_indices = @transform_2, window_bounds = array<i64: 128, 128>}, {pipeline_mode = #tpu.pipeline_mode<synchronous>, transform_indices = @transform_3, window_bounds = array<i64: 1, 128>}, {transform_indices = @transform_4, window_bounds = array<i64: 1, 16, 128>}]} {
    %c0 = arith.constant 0 : index
    %c0_0 = arith.constant 0 : index
    %c0_1 = arith.constant 0 : index
    %0 = vector.load %arg1[%c0, %c0_0, %c0_1] : memref<1x16x16xbf16, #tpu.memory_space<vmem>>, vector<1x16x16xbf16>
    %1 = vector.shape_cast %0 : vector<1x16x16xbf16> to vector<16x16xbf16>
    %2 = arith.extf %1 : vector<16x16xbf16> to vector<16x16xf32>
    %c0_2 = arith.constant 0 : index
    %c0_3 = arith.constant 0 : index
    %c0_4 = arith.constant 0 : index
    %3 = vector.load %arg2[%c0_2, %c0_3, %c0_4] : memref<1x16x128xf32, #tpu.memory_space<vmem>>, vector<1x16x128xf32>
    %4 = vector.shape_cast %3 : vector<1x16x128xf32> to vector<16x128xf32>
    %c0_5 = arith.constant 0 : index
    %c0_6 = arith.constant 0 : index
    %5 = vector.load %arg3[%c0_5, %c0_6] : memref<128x128xf32, #tpu.memory_space<vmem>>, vector<128x128xf32>
    %c0_7 = arith.constant 0 : index
    %c0_8 = arith.constant 0 : index
    %6 = vector.load %arg4[%c0_7, %c0_8] : memref<1x128xf32, #tpu.memory_space<vmem>>, vector<1x128xf32>
    %cst = arith.constant dense<0.000000e+00> : vector<16x128xf32>
    %7 = tpu.matmul %4, %5, %cst {dimension_numbers = #tpu.dot_dimension_numbers<[1], [1], [0], [0], [0, 0, 1, 0], [], []>} : vector<16x128xf32>, vector<128x128xf32>, vector<16x128xf32> -> vector<16x128xf32>
    %8 = tpu.iota {dimensions = array<i32: 1>} : vector<16x128xi32>
    %c32_i32 = arith.constant 32 : i32
    %9 = vector.broadcast %c32_i32 : i32 to vector<16x128xi32>
    %10 = arith.cmpi eq, %8, %9 : vector<16x128xi32>
    %cst_9 = arith.constant 1.000000e+00 : f32
    %11 = vector.broadcast %cst_9 : f32 to vector<16x128xf32>
    %12 = arith.select %10, %11, %7 : vector<16x128xi1>, vector<16x128xf32>
    %cst_10 = arith.constant dense<0.000000e+00> : vector<16x128xf32>
    %13 = tpu.matmul %2, %12, %cst_10 {dimension_numbers = #tpu.dot_dimension_numbers<[1], [0], [0], [1], [0, 0, 1, 1], [], []>} : vector<16x16xf32>, vector<16x128xf32>, vector<16x128xf32> -> vector<16x128xf32>
    %14 = vector.extract_strided_slice %13 {offsets = [0, 32], sizes = [16, 1], strides = [1, 1]} : vector<16x128xf32> to vector<16x1xf32>
    %cst_11 = arith.constant 0.000000e+00 : f32
    %15 = vector.broadcast %cst_11 : f32 to vector<16x1xf32>
    %16 = arith.cmpf ogt, %14, %15 : vector<16x1xf32>
    %17 = vector.shape_cast %16 : vector<16x1xi1> to vector<16x1xi1>
    %18 = vector.broadcast %17 : vector<16x1xi1> to vector<16x128xi1>
    %19 = arith.select %18, %13, %7 : vector<16x128xi1>, vector<16x128xf32>
    %20 = vector.broadcast %6 : vector<1x128xf32> to vector<16x128xf32>
    %21 = arith.addf %19, %20 : vector<16x128xf32>
    %c0_12 = arith.constant 0 : index
    %c0_13 = arith.constant 0 : index
    %c0_14 = arith.constant 0 : index
    %22 = vector.load %arg5[%c0_12, %c0_13, %c0_14] : memref<1x16x128xf32, #tpu.memory_space<vmem>>, vector<1x16x128xf32>
    %23 = vector.shape_cast %22 : vector<1x16x128xf32> to vector<16x128xf32>
    %24 = vector.shape_cast %21 : vector<16x128xf32> to vector<1x16x128xf32>
    tpu.vector_store %arg5[%c0_12, %c0_13, %c0_14], %24 {strides = array<i32>} : memref<1x16x128xf32, #tpu.memory_space<vmem>>, vector<1x16x128xf32>,
    return
  }
  func.func @transform_0(%arg0: i32) -> (i32, i32, i32) {
    %c0_i32 = arith.constant 0 : i32
    %c0_i32_0 = arith.constant 0 : i32
    %c0_i32_1 = arith.constant 0 : i32
    return %arg0, %c0_i32, %c0_i32_0 : i32, i32, i32
  }
  func.func @transform_1(%arg0: i32) -> (i32, i32, i32) {
    %c0_i32 = arith.constant 0 : i32
    %c0_i32_0 = arith.constant 0 : i32
    %c0_i32_1 = arith.constant 0 : i32
    return %arg0, %c0_i32, %c0_i32_0 : i32, i32, i32
  }
  func.func @transform_2(%arg0: i32) -> (i32, i32) {
    %c0_i32 = arith.constant 0 : i32
    %c0_i32_0 = arith.constant 0 : i32
    %c0_i32_1 = arith.constant 0 : i32
    return %c0_i32, %c0_i32_0 : i32, i32
  }
  func.func @transform_3(%arg0: i32) -> (i32, i32) {
    %c0_i32 = arith.constant 0 : i32
    %c0_i32_0 = arith.constant 0 : i32
    %c0_i32_1 = arith.constant 0 : i32
    return %c0_i32, %c0_i32_0 : i32, i32
  }
  func.func @transform_4(%arg0: i32) -> (i32, i32, i32) {
    %c0_i32 = arith.constant 0 : i32
    %c0_i32_0 = arith.constant 0 : i32
    %c0_i32_1 = arith.constant 0 : i32
    return %arg0, %c0_i32, %c0_i32_0 : i32, i32, i32
  }
}

</mosaic_0001>

<llo_original>
// kernel: tpu_custom_call.1
$region0: #{tpu_custom_call.1}
  #allocation0 [shape = 'u32[]', space=smem, size = 0x4, offset = 0x4, fixed_abs, tag = 'smem constant byte address 0x4 - core index']
  #allocation1 [shape = 'u32[144,128]{1,0:T(1,128)}', space=vmem, size = 0x12000, scoped, tag = 'internal scratch']
  %s0 = inlined_call_operand.hbm [shape: bf16[8,16,16], index: 0, kind: input, shape index: {}]
  %s1 = inlined_call_operand.hbm [shape: f32[8,16,128], index: 1, kind: input, shape index: {}]
  %s2 = inlined_call_operand.hbm [shape: f32[128,128], index: 2, kind: input, shape index: {}]
  %s3 = inlined_call_operand.vmem [shape: f32[1,128], index: 3, kind: input, shape index: {}]
  %s4 = inlined_call_operand.hbm [shape: f32[8,16,128], index: 4, kind: output, shape index: {}]
  %s5 = sld [smem:[#allocation0]]
  $region61: #{tpu_custom_call.1} parent=0
    _
  %s7 = ssub.s32 1, %s5
  %s8 = scalar_select 0, %s7, %s5
  $region1: #{tpu_custom_call.1} parent=0
    #allocation2 [shape = 'u8[8192]{0}', space=vmem, size = 0x2000, scoped, tag = 'input window, operand 0']
    #allocation3 [shape = 's32[2]{0}', space=sflag, size = 0x8, scoped, tag = 'scoped memory for tpu_custom_call.1']
    #allocation4 [shape = 's32[2]{0}', space=sflag, size = 0x8, scoped, tag = 'scoped memory for tpu_custom_call.1']
    #allocation5 [shape = 'u8[16384]{0}', space=vmem, size = 0x4000, scoped, tag = 'input window, operand 1']
    #allocation6 [shape = 's32[2]{0}', space=sflag, size = 0x8, scoped, tag = 'scoped memory for tpu_custom_call.1']
    #allocation7 [shape = 'u8[65536]{0}', space=vmem, size = 0x10000, scoped, tag = 'input window, operand 2, single buffered']
    #allocation8 [shape = 'u8[16384]{0}', space=vmem, size = 0x4000, scoped, tag = 'output window, operand 0']
    %9 = vsyncpa [#allocation3], 0
    %s10 = scalar_lea.sflag [#allocation3], 1
    %11 = vsyncpa %s10, 0
    %12 = vsyncpa [#allocation6], 0
    %s13 = scalar_lea.sflag [#allocation6], 1
    %14 = vsyncpa %s13, 0
    %15 = vsyncpa [#allocation4], 0
    %s16 = scalar_lea.sflag [#allocation4], 1
    %17 = vsyncpa %s16, 0
    loop: start=0, step=1, limit=10
    $region2: #{tpu_custom_call.1} parent=1 // loop_pre_header
      _
    $region3: #{tpu_custom_call.1} parent=1 // loop_header
      %s19 = sphi 0, %s23
      %p20 = scmp.ge.s32.totalorder %s19, 10
      %s29 = sphi 0, %s31
      %s32 = sphi 0, %s29
      %s33 = sphi 0, %s32
      %s49 = sphi 0, %s33
      %s55 = sphi 0, %s57
      %s58 = sphi 0, %s55
      %s59 = sphi 0, %s58
      %s75 = sphi 0, %s59
      %s79 = sphi 0, %s79
      %s81 = sphi 0, %s79
      %s82 = sphi 0, %s81
      %s96 = sphi 0, %s82
      %s100 = sphi 0, %s100
      %s102 = sphi 0, %s100
      %s103 = sphi 0, %s102
      %s117 = sphi 0, %s103
      %s123 = sphi 0, %s125
      %s126 = sphi 0, %s123
      %s127 = sphi 0, %s126
      %s143 = sphi 0, %s127
    $region4: #{tpu_custom_call.1} parent=1 // loop_header_branch
      %22 = sbr.rel (%p20) target = $region8
    $region5: #{tpu_custom_call.1} parent=1 // loop_body
      %s24 = ssub.s32 %s19, 1
      %s25 = ssub.s32 %s19, 2
      %s26 = sadd.s32 %s19, 1
      %s27 = ssub.s32 %s19, %s26
      %p28 = scmp.eq.s32.totalorder %s27, 0
      %s30 = sadd.s32 %s29, 1
      %s31 = scalar_select %p28, %s29, %s30
      %p34 = pneg %p28
      %p35 = scmp.eq.s32.totalorder %s19, 7
      %p36 = por %p34, %p35
      %p37 = scmp.ne.s32.totalorder %s29, %s32
      %p38 = scmp.eq.s32.totalorder %s19, 0
      %p39 = por %p37, %p38
      %p40 = scmp.ne.s32.totalorder %s29, %s32
      %p41 = scmp.eq.s32.totalorder %s24, 7
      %p42 = por %p40, %p41
      %p43 = scmp.ne.s32.totalorder %s32, %s33
      %p44 = scmp.eq.s32.totalorder %s24, 0
      %p45 = por %p43, %p44
      %p46 = scmp.ne.s32.totalorder %s32, %s33
      %p47 = scmp.eq.s32.totalorder %s25, 7
      %p48 = por %p46, %p47
      %p50 = scmp.ne.s32.totalorder %s33, %s49
      %p51 = scmp.eq.s32.totalorder %s25, 0
      %p52 = por %p50, %p51
      %s53 = ssub.s32 %s19, %s26
      %p54 = scmp.eq.s32.totalorder %s53, 0
      %s56 = sadd.s32 %s55, 1
      %s57 = scalar_select %p54, %s55, %s56
      %p60 = pneg %p54
      %p61 = scmp.eq.s32.totalorder %s19, 7
      %p62 = por %p60, %p61
      %p63 = scmp.ne.s32.totalorder %s55, %s58
      %p64 = scmp.eq.s32.totalorder %s19, 0
      %p65 = por %p63, %p64
      %p66 = scmp.ne.s32.totalorder %s55, %s58
      %p67 = scmp.eq.s32.totalorder %s24, 7
      %p68 = por %p66, %p67
      %p69 = scmp.ne.s32.totalorder %s58, %s59
      %p70 = scmp.eq.s32.totalorder %s24, 0
      %p71 = por %p69, %p70
      %p72 = scmp.ne.s32.totalorder %s58, %s59
      %p73 = scmp.eq.s32.totalorder %s25, 7
      %p74 = por %p72, %p73
      %p76 = scmp.ne.s32.totalorder %s59, %s75
      %p77 = scmp.eq.s32.totalorder %s25, 0
      %p78 = por %p76, %p77
      %s80 = sadd.s32 %s79, 1
      %p83 = scmp.eq.s32.totalorder %s19, 7
      %p84 = scmp.ne.s32.totalorder %s79, %s81
      %p85 = scmp.eq.s32.totalorder %s19, 0
      %p86 = por %p84, %p85
      %p87 = scmp.ne.s32.totalorder %s79, %s81
      %p88 = scmp.eq.s32.totalorder %s24, 7
      %p89 = por %p87, %p88
      %p90 = scmp.ne.s32.totalorder %s81, %s82
      %p91 = scmp.eq.s32.totalorder %s24, 0
      %p92 = por %p90, %p91
      %p93 = scmp.ne.s32.totalorder %s81, %s82
      %p94 = scmp.eq.s32.totalorder %s25, 7
      %p95 = por %p93, %p94
      %p97 = scmp.ne.s32.totalorder %s82, %s96
      %p98 = scmp.eq.s32.totalorder %s25, 0
      %p99 = por %p97, %p98
      %s101 = sadd.s32 %s100, 1
      %p104 = scmp.eq.s32.totalorder %s19, 7
      %p105 = scmp.ne.s32.totalorder %s100, %s102
      %p106 = scmp.eq.s32.totalorder %s19, 0
      %p107 = por %p105, %p106
      %p108 = scmp.ne.s32.totalorder %s100, %s102
      %p109 = scmp.eq.s32.totalorder %s24, 7
      %p110 = por %p108, %p109
      %p111 = scmp.ne.s32.totalorder %s102, %s103
      %p112 = scmp.eq.s32.totalorder %s24, 0
      %p113 = por %p111, %p112
      %p114 = scmp.ne.s32.totalorder %s102, %s103
      %p115 = scmp.eq.s32.totalorder %s25, 7
      %p116 = por %p114, %p115
      %p118 = scmp.ne.s32.totalorder %s103, %s117
      %p119 = scmp.eq.s32.totalorder %s25, 0
      %p120 = por %p118, %p119
      %s121 = ssub.s32 %s19, %s26
      %p122 = scmp.eq.s32.totalorder %s121, 0
      %s124 = sadd.s32 %s123, 1
      %s125 = scalar_select %p122, %s123, %s124
      %p128 = pneg %p122
      %p129 = scmp.eq.s32.totalorder %s19, 7
      %p130 = por %p128, %p129
      %p131 = scmp.ne.s32.totalorder %s123, %s126
      %p132 = scmp.eq.s32.totalorder %s19, 0
      %p133 = por %p131, %p132
      %p134 = scmp.ne.s32.totalorder %s123, %s126
      %p135 = scmp.eq.s32.totalorder %s24, 7
      %p136 = por %p134, %p135
      %p137 = scmp.ne.s32.totalorder %s126, %s127
      %p138 = scmp.eq.s32.totalorder %s24, 0
      %p139 = por %p137, %p138
      %p140 = scmp.ne.s32.totalorder %s126, %s127
      %p141 = scmp.eq.s32.totalorder %s25, 7
      %p142 = por %p140, %p141
      %p144 = scmp.ne.s32.totalorder %s127, %s143
      %p145 = scmp.eq.s32.totalorder %s25, 0
      %p146 = por %p144, %p145
      %p147 = scmp.le.s32.totalorder 1, %s19
      %p148 = scmp.lt.s32.totalorder %s19, 9
      %p149 = pnand %p147, %p148
      %p150 = pneg %p149
      // Predicated region
      $region9: #{tpu_custom_call.1} parent=5 // pred_check
        _
      $region10: #{tpu_custom_call.1} parent=5 // pred_check_branch
        %152 = sbr.rel (%p149) target = $region12
      $region11: #{tpu_custom_call.1} parent=5 // pred_region
        %s153 = ssub.s32 %s19, 1
        // Predicated region
        $region13: #{tpu_custom_call.1} parent=11 // pred_check
          %p154 = pneg %p92
        $region14: #{tpu_custom_call.1} parent=11 // pred_check_branch
          %156 = sbr.rel (%p154) target = $region16
        $region15: #{tpu_custom_call.1} parent=11 // pred_region
          %s158 = ssub.s32 2048, 2048
          %159 = vsyncadd [#allocation6], %s158
          %s160 = sshll.u32 [#allocation7], 4
          %s161 = int_to_ptr.vmem [resolvable:$true] %s160
          %166 = dma.hbm_to_vmem [thread:$0]  %s2, 2048, %s161, [#allocation6], 128, 128, 8
        $region16: #{tpu_custom_call.1} parent=11 // pred_fallthru
          _
        // Predicated region
        $region17: #{tpu_custom_call.1} parent=11 // pred_check
          %p167 = pneg %p113
        $region18: #{tpu_custom_call.1} parent=11 // pred_check_branch
          %169 = sbr.rel (%p167) target = $region20
        $region19: #{tpu_custom_call.1} parent=11 // pred_region
          _
        $region20: #{tpu_custom_call.1} parent=11 // pred_fallthru
          _
      $region12: #{tpu_custom_call.1} parent=5 // pred_fallthru
        _
      %p170 = scmp.lt.s32.totalorder %s19, 8
      // Predicated region
      $region21: #{tpu_custom_call.1} parent=5 // pred_check
        %p171 = pneg %p170
      $region22: #{tpu_custom_call.1} parent=5 // pred_check_branch
        %173 = sbr.rel (%p171) target = $region24
      $region23: #{tpu_custom_call.1} parent=5 // pred_region
        // Predicated region
        $region25: #{tpu_custom_call.1} parent=23 // pred_check
          %p174 = pneg %p39
        $region26: #{tpu_custom_call.1} parent=23 // pred_check_branch
          %176 = sbr.rel (%p174) target = $region28
        $region27: #{tpu_custom_call.1} parent=23 // pred_region
          %s177 = sand.u32 %s29, 1
          %s178 = scalar_lea.sflag [#allocation3], %s177
          %s179 = sand.u32 %s29, 1
          %s180 = smul.addr %s179, 8
          %s181 = scalar_lea.vmem [#allocation2], %s180
          %s183 = ssub.s32 128, 128
          %184 = vsyncadd %s178, %s183
          %s185 = smul.addr %s19, 2
          %s186 = smul.addr %s185, 64
          %s187 = scalar_lea.hbm %s0, %s186
          %s188 = sshll.u32 %s181, 4
          %s189 = int_to_ptr.vmem [resolvable:$true] %s188
          %194 = dma.hbm_to_vmem [thread:$0]  %s187, 128, %s189, %s178, 64, 64, 4
        $region28: #{tpu_custom_call.1} parent=23 // pred_fallthru
          _
        // Predicated region
        $region29: #{tpu_custom_call.1} parent=23 // pred_check
          %p195 = pneg %p65
        $region30: #{tpu_custom_call.1} parent=23 // pred_check_branch
          %197 = sbr.rel (%p195) target = $region32
        $region31: #{tpu_custom_call.1} parent=23 // pred_region
          %s198 = sand.u32 %s19, 1
          %s199 = scalar_lea.sflag [#allocation6], %s198
          %s200 = sand.u32 %s55, 1
          %s201 = smul.addr %s200, 16
          %s202 = scalar_lea.vmem [#allocation5], %s201
          %s204 = ssub.s32 256, 256
          %205 = vsyncadd %s199, %s204
          %s206 = smul.addr %s19, 2
          %s207 = smul.addr %s206, 128
          %s208 = scalar_lea.hbm %s1, %s207
          %s209 = sshll.u32 %s202, 4
          %s210 = int_to_ptr.vmem [resolvable:$true] %s209
          %215 = dma.hbm_to_vmem [thread:$0]  %s208, 256, %s210, %s199, 128, 128, 8
        $region32: #{tpu_custom_call.1} parent=23 // pred_fallthru
          _
      $region24: #{tpu_custom_call.1} parent=5 // pred_fallthru
        _
      %p216 = scmp.le.s32.totalorder 1, %s19
      %p217 = scmp.lt.s32.totalorder %s19, 9
      %p218 = pnand %p216, %p217
      %p219 = pneg %p218
      // Predicated region
      $region33: #{tpu_custom_call.1} parent=5 // pred_check
        _
      $region34: #{tpu_custom_call.1} parent=5 // pred_check_branch
        %221 = sbr.rel (%p218) target = $region36
      $region35: #{tpu_custom_call.1} parent=5 // pred_region
        %s222 = ssub.s32 %s19, 1
        %s223 = sand.u32 %s32, 1
        %s224 = scalar_lea.sflag [#allocation3], %s223
        %s225 = sand.u32 %s32, 1
        %s226 = smul.addr %s225, 8
        %s227 = scalar_lea.vmem [#allocation2], %s226
        // Predicated region
        $region37: #{tpu_custom_call.1} parent=35 // pred_check
          %p228 = pneg %p45
        $region38: #{tpu_custom_call.1} parent=35 // pred_check_branch
          %230 = sbr.rel (%p228) target = $region40
        $region39: #{tpu_custom_call.1} parent=35 // pred_region
          %231 = dma.done %s224, 128
        $region40: #{tpu_custom_call.1} parent=35 // pred_fallthru
          _
        %s232 = sand.u32 %s24, 1
        %s233 = scalar_lea.sflag [#allocation6], %s232
        %s234 = sand.u32 %s58, 1
        %s235 = smul.addr %s234, 16
        %s236 = scalar_lea.vmem [#allocation5], %s235
        // Predicated region
        $region41: #{tpu_custom_call.1} parent=35 // pred_check
          %p237 = pneg %p71
        $region42: #{tpu_custom_call.1} parent=35 // pred_check_branch
          %239 = sbr.rel (%p237) target = $region44
        $region43: #{tpu_custom_call.1} parent=35 // pred_region
          %240 = dma.done %s233, 256
        $region44: #{tpu_custom_call.1} parent=35 // pred_fallthru
          _
        // Predicated region
        $region45: #{tpu_custom_call.1} parent=35 // pred_check
          %p241 = pneg %p92
        $region46: #{tpu_custom_call.1} parent=35 // pred_check_branch
          %243 = sbr.rel (%p241) target = $region48
        $region47: #{tpu_custom_call.1} parent=35 // pred_region
          %244 = dma.done [#allocation6], 2048
        $region48: #{tpu_custom_call.1} parent=35 // pred_fallthru
          _
        %s245 = sand.u32 %s32, 1
        %s246 = scalar_lea.sflag [#allocation3], %s245
        %s247 = sand.u32 %s32, 1
        %s248 = smul.addr %s247, 8
        %s249 = scalar_lea.vmem [#allocation2], %s248
        %p250 = pneg %p45
        %p251 = pneg %p42
        %s252 = sand.u32 %s24, 1
        %s253 = scalar_lea.sflag [#allocation6], %s252
        %s254 = sand.u32 %s58, 1
        %s255 = smul.addr %s254, 16
        %s256 = scalar_lea.vmem [#allocation5], %s255
        %p257 = pneg %p71
        %p258 = pneg %p68
        %p259 = pneg %p92
        %p260 = pneg %p89
        %p261 = pneg %p113
        %p262 = pneg %p110
        %p263 = pneg %p139
        %p264 = pneg %p136
        %s265 = sand.u32 %s126, 1
        %s266 = scalar_lea.sflag [#allocation4], %s265
        %s267 = sand.u32 %s126, 1
        %s268 = smul.addr %s267, 16
        %s269 = scalar_lea.vmem [#allocation8], %s268
        %v270 = vld [vmem:[%s227] sm:$0xf]
        %v271 = vld [vmem:[%s227 + $0x4] sm:$0xf]
        %v272 = vunpack.c.l.bf16 %v270
        %v273 = vunpack.c.l.bf16 %v271
        %v274 = vld [vmem:[%s236] sm:$0xff]
        %v275 = vld [vmem:[%s236 + $0x8] sm:$0xff]
        %v276 = vld [vmem:[#allocation7] sm:$0xff]
        %v277 = vld [vmem:[#allocation7 + $0x8] sm:$0xff]
        %v278 = vld [vmem:[#allocation7 + $0x10] sm:$0xff]
        %v279 = vld [vmem:[#allocation7 + $0x18] sm:$0xff]
        %v280 = vld [vmem:[#allocation7 + $0x20] sm:$0xff]
        %v281 = vld [vmem:[#allocation7 + $0x28] sm:$0xff]
        %v282 = vld [vmem:[#allocation7 + $0x30] sm:$0xff]
        %v283 = vld [vmem:[#allocation7 + $0x38] sm:$0xff]
        %v284 = vld [vmem:[#allocation7 + $0x40] sm:$0xff]
        %v285 = vld [vmem:[#allocation7 + $0x48] sm:$0xff]
        %v286 = vld [vmem:[#allocation7 + $0x50] sm:$0xff]
        %v287 = vld [vmem:[#allocation7 + $0x58] sm:$0xff]
        %v288 = vld [vmem:[#allocation7 + $0x60] sm:$0xff]
        %v289 = vld [vmem:[#allocation7 + $0x68] sm:$0xff]
        %v290 = vld [vmem:[#allocation7 + $0x70] sm:$0xff]
        %v291 = vld [vmem:[#allocation7 + $0x78] sm:$0xff]
        %v292 = vld [vmem:[%s3] sm:$0x1]
        %293 = vmatprep.subr.mxu0 0.0
        %294 = vmatpush1.xpose.msra.mxu0 %v276
        %295 = vmatprep.subr.mxu0 0.0
        %296 = vmatpush1.xpose.msra.mxu0 %v277
        %297 = vmatprep.subr.mxu0 0.0
        %298 = vmatpush1.xpose.msra.mxu0 %v278
        %299 = vmatprep.subr.mxu0 0.0
        %300 = vmatpush1.xpose.msra.mxu0 %v279
        %301 = vmatprep.subr.mxu0 0.0
        %302 = vmatpush1.xpose.msra.mxu0 %v280
        %303 = vmatprep.subr.mxu0 0.0
        %304 = vmatpush1.xpose.msra.mxu0 %v281
        %305 = vmatprep.subr.mxu0 0.0
        %306 = vmatpush1.xpose.msra.mxu0 %v282
        %307 = vmatprep.subr.mxu0 0.0
        %308 = vmatpush1.xpose.msra.mxu0 %v283
        %309 = vmatprep.subr.mxu0 0.0
        %310 = vmatpush1.xpose.msra.mxu0 %v284
        %311 = vmatprep.subr.mxu0 0.0
        %312 = vmatpush1.xpose.msra.mxu0 %v285
        %313 = vmatprep.subr.mxu0 0.0
        %314 = vmatpush1.xpose.msra.mxu0 %v286
        %315 = vmatprep.subr.mxu0 0.0
        %316 = vmatpush1.xpose.msra.mxu0 %v287
        %317 = vmatprep.subr.mxu0 0.0
        %318 = vmatpush1.xpose.msra.mxu0 %v288
        %319 = vmatprep.subr.mxu0 0.0
        %320 = vmatpush1.xpose.msra.mxu0 %v289
        %321 = vmatprep.subr.mxu0 0.0
        %322 = vmatpush1.xpose.msra.mxu0 %v290
        %323 = vmatprep.subr.mxu0 0.0
        %324 = vmatpush1.xpose.msra.mxu0 %v291
        %325 = vmatprep.subr.mxu0 0.0
        %326 = vmatpush1.xpose.msra.mxu0 0.0
        %327 = vmatprep.subr.mxu0 0.0
        %328 = vmatpush1.xpose.msra.mxu0 0.0
        %329 = vmatprep.subr.mxu0 0.0
        %330 = vmatpush1.xpose.msra.mxu0 0.0
        %331 = vmatprep.subr.mxu0 0.0
        %332 = vmatpush1.xpose.msra.mxu0 0.0
        %333 = vmatprep.subr.mxu0 0.0
        %334 = vmatpush1.xpose.msra.mxu0 0.0
        %335 = vmatprep.subr.mxu0 0.0
        %336 = vmatpush1.xpose.msra.mxu0 0.0
        %337 = vmatprep.subr.mxu0 0.0
        %338 = vmatpush1.xpose.msra.mxu0 0.0
        %339 = vmatprep.subr.mxu0 0.0
        %340 = vmatpush1.xpose.msra.mxu0 0.0
        %341 = vmatprep.subr.mxu0 0.0
        %342 = vmatpush1.xpose.msra.mxu0 0.0
        %343 = vmatprep.subr.mxu0 0.0
        %344 = vmatpush1.xpose.msra.mxu0 0.0
        %345 = vmatprep.subr.mxu0 0.0
        %346 = vmatpush1.xpose.msra.mxu0 0.0
        %347 = vmatprep.subr.mxu0 0.0
        %348 = vmatpush1.xpose.msra.mxu0 0.0
        %349 = vmatprep.subr.mxu0 0.0
        %350 = vmatpush1.xpose.msra.mxu0 0.0
        %351 = vmatprep.subr.mxu0 0.0
        %352 = vmatpush1.xpose.msra.mxu0 0.0
        %353 = vmatprep.subr.mxu0 0.0
        %354 = vmatpush1.xpose.msra.mxu0 0.0
        %355 = vmatprep.subr.mxu0 0.0
        %356 = vmatpush1.xpose.msra.mxu0 0.0
        %357 = vmatprep.mubr.f32.mxu0 0.0
        %358 = vmatmul.mubr.f32.gmra.mrb[0].mxu0 %v274
        %v359 = vpop.f32.mrb[0].mxu0
        %v360 = vadd.f32 0.0, %v359
        %v361 = vpop.f32.mrb[0].mxu0
        %362 = vmatprep.mubr.f32.mxu0 0.0
        %363 = vmatmul.mubr.f32.gmra.mrb[0].mxu0 %v275
        %v364 = vpop.f32.mrb[0].mxu0
        %v365 = vadd.f32 0.0, %v364
        %v366 = vpop.f32.mrb[0].mxu0
        %367 = vdwg.mxu0
        %v368 = vlaneseq
        %v369 = vand.u32 %v368, 127
        %vm370 = vcmp.eq.s32.totalorder %v369, 32
        %v371 = vsel %vm370, 1.0, %v360
        %v372 = vsel %vm370, 1.0, %v365
        %vm373 = vcmask 130048
        %v375 = vsel %vm373, %v272, 0
        %v378 = vsel %vm373, %v273, 0
        %380 = vmatprep.subr.mxu0 0.0
        %381 = vmatpush1.msra.mxu0 %v371
        %382 = vmatprep.subr.mxu0 0.0
        %383 = vmatpush1.msra.mxu0 %v372
        %384 = vmatprep.subr.mxu0 0.0
        %385 = vmatpush1.msra.mxu0 0.0
        %386 = vmatprep.subr.mxu0 0.0
        %387 = vmatpush1.msra.mxu0 0.0
        %388 = vmatprep.subr.mxu0 0.0
        %389 = vmatpush1.msra.mxu0 0.0
        %390 = vmatprep.subr.mxu0 0.0
        %391 = vmatpush1.msra.mxu0 0.0
        %392 = vmatprep.subr.mxu0 0.0
        %393 = vmatpush1.msra.mxu0 0.0
        %394 = vmatprep.subr.mxu0 0.0
        %395 = vmatpush1.msra.mxu0 0.0
        %396 = vmatprep.subr.mxu0 0.0
        %397 = vmatpush1.msra.mxu0 0.0
        %398 = vmatprep.subr.mxu0 0.0
        %399 = vmatpush1.msra.mxu0 0.0
        %400 = vmatprep.subr.mxu0 0.0
        %401 = vmatpush1.msra.mxu0 0.0
        %402 = vmatprep.subr.mxu0 0.0
        %403 = vmatpush1.msra.mxu0 0.0
        %404 = vmatprep.subr.mxu0 0.0
        %405 = vmatpush1.msra.mxu0 0.0
        %406 = vmatprep.subr.mxu0 0.0
        %407 = vmatpush1.msra.mxu0 0.0
        %408 = vmatprep.subr.mxu0 0.0
        %409 = vmatpush1.msra.mxu0 0.0
        %410 = vmatprep.subr.mxu0 0.0
        %411 = vmatpush1.msra.mxu0 0.0
        %412 = vmatprep.subr.mxu0 0.0
        %413 = vmatpush1.msra.mxu0 0.0
        %414 = vmatprep.subr.mxu0 0.0
        %415 = vmatpush1.msra.mxu0 0.0
        %416 = vmatprep.subr.mxu0 0.0
        %417 = vmatpush1.msra.mxu0 0.0
        %418 = vmatprep.subr.mxu0 0.0
        %419 = vmatpush1.msra.mxu0 0.0
        %420 = vmatprep.subr.mxu0 0.0
        %421 = vmatpush1.msra.mxu0 0.0
        %422 = vmatprep.subr.mxu0 0.0
        %423 = vmatpush1.msra.mxu0 0.0
        %424 = vmatprep.subr.mxu0 0.0
        %425 = vmatpush1.msra.mxu0 0.0
        %426 = vmatprep.subr.mxu0 0.0
        %427 = vmatpush1.msra.mxu0 0.0
        %428 = vmatprep.subr.mxu0 0.0
        %429 = vmatpush1.msra.mxu0 0.0
        %430 = vmatprep.subr.mxu0 0.0
        %431 = vmatpush1.msra.mxu0 0.0
        %432 = vmatprep.subr.mxu0 0.0
        %433 = vmatpush1.msra.mxu0 0.0
        %434 = vmatprep.subr.mxu0 0.0
        %435 = vmatpush1.msra.mxu0 0.0
        %436 = vmatprep.subr.mxu0 0.0
        %437 = vmatpush1.msra.mxu0 0.0
        %438 = vmatprep.subr.mxu0 0.0
        %439 = vmatpush1.msra.mxu0 0.0
        %440 = vmatprep.subr.mxu0 0.0
        %441 = vmatpush1.msra.mxu0 0.0
        %442 = vmatprep.subr.mxu0 0.0
        %443 = vmatpush1.msra.mxu0 0.0
        %444 = vmatprep.mubr.f32.mxu0 0.0
        %445 = vmatmul.mubr.f32.gmra.mrb[0].mxu0 %v375
        %v446 = vpop.f32.mrb[0].mxu0
        %v447 = vadd.f32 0.0, %v446
        %v448 = vpop.f32.mrb[0].mxu0
        %449 = vmatprep.mubr.f32.mxu0 0.0
        %450 = vmatmul.mubr.f32.gmra.mrb[0].mxu0 %v378
        %v451 = vpop.f32.mrb[0].mxu0
        %v452 = vadd.f32 0.0, %v451
        %v453 = vpop.f32.mrb[0].mxu0
        %454 = vdwg.mxu0
        %vm455 = vcmp.gt.f32.partialorder %v447, 0.0
        %vm456 = vcmp.gt.f32.partialorder %v452, 0.0
        %v457 = vsel %vm455, 1, 0
        %v458 = vsel %vm456, 1, 0
        %459 = vset.pattern.permute.xlu0 32
        %460 = vperm.xlu0 %459, %v457
        %v461 = vpop.permute.xlu0 %460
        %462 = vset.pattern.permute.xlu0 32
        %463 = vperm.xlu0 %462, %v458
        %v464 = vpop.permute.xlu0 %463
        %vm465 = vcmp.eq.s32.totalorder %v461, 1
        %vm466 = vcmp.eq.s32.totalorder %v464, 1
        %v467 = vsel %vm465, %v447, %v360
        %v468 = vsel %vm466, %v452, %v365
        %v470 = vlaneseq
        %v471 = vshrl.u32 %v470, 7
        %v472 = vsub.s32 0, %v471
        %v473 = vrot.slane %v292, %v472
        %v475 = vadd.f32 %v467, %v473
        %v476 = vadd.f32 %v468, %v473
        %477 = vst [vmem:[%s269] sm:$0xff] %v475
        %478 = vst [vmem:[%s269 + $0x8] sm:$0xff] %v476
        %s479 = sand.u32 %s126, 1
        %s480 = scalar_lea.sflag [#allocation4], %s479
        %s481 = sand.u32 %s126, 1
        %s482 = smul.addr %s481, 16
        %s483 = scalar_lea.vmem [#allocation8], %s482
        // Predicated region
        $region49: #{tpu_custom_call.1} parent=35 // pred_check
          %p484 = pneg %p136
        $region50: #{tpu_custom_call.1} parent=35 // pred_check_branch
          %486 = sbr.rel (%p484) target = $region52
        $region51: #{tpu_custom_call.1} parent=35 // pred_region
          %s488 = ssub.s32 256, 256
          %489 = vsyncadd %s480, %s488
          %s490 = smul.addr %s24, 2
          %s491 = smul.addr %s490, 128
          %s492 = scalar_lea.hbm %s4, %s491
          %s493 = sshll.u32 %s483, 4
          %s494 = int_to_ptr.vmem [resolvable:$true] %s493
          %499 = dma.vmem_to_hbm [thread:$0]  %s494, 256, %s492, %s480, 128, 128, 8
        $region52: #{tpu_custom_call.1} parent=35 // pred_fallthru
          _
      $region36: #{tpu_custom_call.1} parent=5 // pred_fallthru
        _
      %p500 = scmp.le.s32.totalorder 2, %s19
      // Predicated region
      $region53: #{tpu_custom_call.1} parent=5 // pred_check
        %p501 = pneg %p500
      $region54: #{tpu_custom_call.1} parent=5 // pred_check_branch
        %503 = sbr.rel (%p501) target = $region56
      $region55: #{tpu_custom_call.1} parent=5 // pred_region
        %s504 = ssub.s32 %s19, 2
        // Predicated region
        $region57: #{tpu_custom_call.1} parent=55 // pred_check
          %p505 = pneg %p142
        $region58: #{tpu_custom_call.1} parent=55 // pred_check_branch
          %507 = sbr.rel (%p505) target = $region60
        $region59: #{tpu_custom_call.1} parent=55 // pred_region
          %s508 = sand.u32 %s127, 1
          %s509 = scalar_lea.sflag [#allocation4], %s508
          %s510 = sand.u32 %s127, 1
          %s511 = smul.addr %s510, 16
          %s512 = scalar_lea.vmem [#allocation8], %s511
          %513 = dma.done %s509, 256
        $region60: #{tpu_custom_call.1} parent=55 // pred_fallthru
          _
      $region56: #{tpu_custom_call.1} parent=5 // pred_fallthru
        _
    $region6: #{tpu_custom_call.1} parent=1 // loop_footer
      %s23 = sadd.s32 1, %s19
    $region7: #{tpu_custom_call.1} parent=1 // loop_footer_branch
      %18 = sbr.rel target = $region3
    $region8: #{tpu_custom_call.1} parent=1 // loop_exit
      _
    %514 = vsyncpa [#allocation3], 1
    %s515 = scalar_lea.sflag [#allocation3], 1
    %516 = vsyncpa %s515, 1
    %517 = vsyncpa [#allocation6], 1
    %s518 = scalar_lea.sflag [#allocation6], 1
    %519 = vsyncpa %s518, 1
    %520 = vsyncpa [#allocation4], 1
    %s521 = scalar_lea.sflag [#allocation4], 1
    %522 = vsyncpa %s521, 1

</llo_original>
